<compile_context>
chip_gen: v7x
topology: tpu7x:2x2x1
jax: 0.10.0
libtpu: 0.0.40
codegen_flags: <defaults>
</compile_context>

<pallas_src>
import jax
import jax.numpy as jnp
from jax.experimental import pallas as pl
from jax.experimental.pallas import tpu as pltpu

LANE = 128
SUBLANE_F32 = 8
SUBLANE_BF16 = 16
TB_MAX = 512


def _round_up(n, m):
    return ((n + m - 1) // m) * m


def _place(a, rows, cols, row_off=0, col_off=0):
    """Embed matrix `a` (f32) into a zero (rows, cols) f32 matrix at an offset."""
    a = jnp.asarray(a, jnp.float32)
    out = jnp.zeros((rows, cols), jnp.float32)
    return out.at[row_off:row_off + a.shape[0], col_off:col_off + a.shape[1]].set(a)


# -----------------------------------------------------------------------------
# Kernel
# -----------------------------------------------------------------------------
def _cvae_kernel(
    xc_ref,                     # (TB, p_xc)  fused [x | cond], batch-tiled
    w1_ref, b1_ref,             # encoder layer 1
    w2p_ref, b2p_ref,           # encoder layer 2, cols packed to mu/log_var lanes
    w3z_ref, w3c_ref, b3_ref,   # decoder layer 1 (z rows at mu lanes, cond rows in xc)
    w4p_ref, b4p_ref,           # decoder layer 2, cols packed to recon lanes
    out_ref,                    # (TB, p_out) packed [recon | mu | log_var]
):
    cdt = w1_ref.dtype          # matmul operand dtype (f32 or bf16); f32 accumulation
    xc = xc_ref[...]

    # ---- encoder layer 1 ----
    h1 = jnp.dot(xc, w1_ref[...], preferred_element_type=jnp.float32) + b1_ref[...]
    h1 = jnp.maximum(h1, 0.0).astype(cdt)

    # ---- encoder layer 2: mu / log_var land on their packed lane offsets ----
    mulv = jnp.dot(h1, w2p_ref[...], preferred_element_type=jnp.float32) + b2p_ref[...]

    # ---- reparametrize (eval mode): z = mu ----
    # TODO(synk): training-mode sampling via pltpu.prng_seed / prng_random_bits.

    # ---- decoder layer 1 ----
    # z-part: w3z has nonzero rows only at mu's packed lanes -> reads mu from mulv.
    # cond-part: w3c has nonzero rows only at cond's lanes inside xc -> no
    # separate cond input DMA.
    h2 = (jnp.dot(mulv.astype(cdt), w3z_ref[...], preferred_element_type=jnp.float32)
          + jnp.dot(xc, w3c_ref[...], preferred_element_type=jnp.float32)
          + b3_ref[...])
    h2 = jnp.maximum(h2, 0.0).astype(cdt)

    # ---- decoder layer 2 + output ReLU (nonzero only on recon lanes) ----
    recon = jnp.dot(h2, w4p_ref[...], preferred_element_type=jnp.float32) + b4p_ref[...]
    recon = jnp.maximum(recon, 0.0)

    # recon / mu / log_var occupy disjoint lanes -> packing is one VALU add.
    out_ref[...] = (recon + mulv).astype(out_ref.dtype)


# -----------------------------------------------------------------------------
# Parameter init / layout prep
# -----------------------------------------------------------------------------
def init_params(key, input_dim, mid_dim, features, num_classes):
    """torch.nn.Linear-style uniform init; weights stored as (in, out)."""
    def linear(k, fan_in, fan_out):
        kw, kb = jax.random.split(k)
        bound = 1.0 / jnp.sqrt(fan_in)
        w = jax.random.uniform(kw, (fan_in, fan_out), jnp.float32, -bound, bound)
        b = jax.random.uniform(kb, (1, fan_out), jnp.float32, -bound, bound)
        return w, b

    k1, k2, k3, k4 = jax.random.split(key, 4)
    w1, b1 = linear(k1, input_dim + num_classes, mid_dim)   # encoder[0]
    w2, b2 = linear(k2, mid_dim, 2 * features)              # encoder[2]
    w3, b3 = linear(k3, features + num_classes, mid_dim)    # decoder[0]
    w4, b4 = linear(k4, mid_dim, input_dim)                 # decoder[2]
    return {"w1": w1, "b1": b1, "w2": w2, "b2": b2,
            "w3": w3, "b3": b3, "w4": w4, "b4": b4}


def prepare_params(params, input_dim, mid_dim, features, num_classes,
                   compute_dtype=jnp.float32, out_dtype=jnp.float32):
    """One-time layout prep: lane-pad, pack output columns, embed cond rows."""
    p_xc = _round_up(input_dim + num_classes, LANE)
    p_mid = _round_up(mid_dim, LANE)
    p_out = _round_up(input_dim + 2 * features, LANE)

    mu_off = input_dim
    lv_off = input_dim + features

    w2, b2, w3 = params["w2"], params["b2"], params["w3"]

    prepared = {
        # encoder layer 1 (fused [x | cond] input)
        "w1": _place(params["w1"], p_xc, p_mid).astype(compute_dtype),
        "b1": _place(params["b1"], 1, p_mid),
        # encoder layer 2: mu cols at [mu_off, ...), log_var cols at [lv_off, ...)
        "w2p": (_place(w2[:, :features], p_mid, p_out, col_off=mu_off)
                + _place(w2[:, features:], p_mid, p_out, col_off=lv_off)
                ).astype(compute_dtype),
        "b2p": (_place(b2[:, :features], 1, p_out, col_off=mu_off)
                + _place(b2[:, features:], 1, p_out, col_off=lv_off)),
        # decoder layer 1: z (= mu) rows re-laid-out to mu's packed lane offsets
        "w3z": _place(w3[:features, :], p_out, p_mid, row_off=mu_off
                      ).astype(compute_dtype),
        # cond rows embedded at cond's lane offsets inside xc
        "w3c": _place(w3[features:, :], p_xc, p_mid, row_off=input_dim
                      ).astype(compute_dtype),
        "b3": _place(params["b3"], 1, p_mid),
        # decoder layer 2: recon cols at [0, input_dim)
        "w4p": _place(params["w4"], p_mid, p_out).astype(compute_dtype),
        "b4p": _place(params["b4"], 1, p_out),
    }
    dims = dict(input_dim=input_dim, mid_dim=mid_dim, features=features,
                num_classes=num_classes, compute_dtype=compute_dtype,
                out_dtype=out_dtype, p_xc=p_xc, p_mid=p_mid, p_out=p_out)
    return prepared, dims


def prepare_inputs(x, condition, dims):
    """Fuse + lane-pad the encoder input once (persist/reuse in serving loops)."""
    p_xc = dims["p_xc"]
    xc = jnp.concatenate([x, condition], axis=1)
    xc = jnp.pad(xc, ((0, 0), (0, p_xc - xc.shape[1])))
    return xc.astype(dims["compute_dtype"])


def _choose_batch_tile(B, compute_dtype):
    """Sublane-packed batch tile; >=2 grid steps when possible (v7x megacore)."""
    sub = SUBLANE_BF16 if jnp.dtype(compute_dtype) == jnp.dtype(jnp.bfloat16) \
        else SUBLANE_F32
    if B <= sub:
        return _round_up(max(B, 1), sub)
    return min(TB_MAX, _round_up(pl.cdiv(B, 2), sub))


# -----------------------------------------------------------------------------
# Forward wrapper
# -----------------------------------------------------------------------------
def cvae_forward(x, condition, prepared, dims, xc=None):
    """x: (B, input_dim) f32, condition: (B, num_classes) f32."""
    input_dim = dims["input_dim"]
    features = dims["features"]
    cdt = dims["compute_dtype"]
    out_dtype = dims["out_dtype"]
    p_xc, p_mid, p_out = dims["p_xc"], dims["p_mid"], dims["p_out"]
    B = x.shape[0]

    if xc is None:
        xc = prepare_inputs(x, condition, dims)

    TB = _choose_batch_tile(B, cdt)
    B_pad = _round_up(B, TB)
    if B_pad != B:
        xc = jnp.pad(xc, ((0, B_pad - B), (0, 0)))
    grid = (B_pad // TB,)

    batch_spec = lambda n: pl.BlockSpec((TB, n), lambda i: (i, 0))
    resident = lambda a: pl.BlockSpec(a.shape, lambda i: (0, 0))

    # Cost estimate from the padded shapes actually processed.
    flops = 2 * B_pad * (p_xc * p_mid        # encoder layer 1
                         + p_mid * p_out     # encoder layer 2 (packed mu/lv)
                         + p_out * p_mid     # decoder layer 1, z part
                         + p_xc * p_mid      # decoder layer 1, cond part
                         + p_mid * p_out)    # decoder layer 2
    weight_bytes = sum(int(v.size) * v.dtype.itemsize for v in prepared.values())
    io_bytes = (B_pad * p_xc * jnp.dtype(cdt).itemsize
                + B_pad * p_out * jnp.dtype(out_dtype).itemsize)
    cost = pl.CostEstimate(flops=flops, transcendentals=0,
                           bytes_accessed=weight_bytes + io_bytes)

    packed = pl.pallas_call(
        _cvae_kernel,
        out_shape=jax.ShapeDtypeStruct((B_pad, p_out), out_dtype),
        grid=grid,
        in_specs=[
            batch_spec(p_xc),
            resident(prepared["w1"]), resident(prepared["b1"]),
            resident(prepared["w2p"]), resident(prepared["b2p"]),
            resident(prepared["w3z"]), resident(prepared["w3c"]),
            resident(prepared["b3"]),
            resident(prepared["w4p"]), resident(prepared["b4p"]),
        ],
        out_specs=batch_spec(p_out),
        compiler_params=pltpu.CompilerParams(
            dimension_semantics=("parallel",)),
        cost_estimate=cost,
    )(xc,
      prepared["w1"], prepared["b1"],
      prepared["w2p"], prepared["b2p"],
      prepared["w3z"], prepared["w3c"], prepared["b3"],
      prepared["w4p"], prepared["b4p"])

    # Slice the packed views back out.
    recon = packed[:B, :input_dim]
    mu = packed[:B, input_dim:input_dim + features]
    log_var = packed[:B, input_dim + features:input_dim + 2 * features]
    # PyTorch forward returns z = cat([z, condition]); eval-mode z == mu.
    z = jnp.concatenate([mu, condition.astype(mu.dtype)], axis=1)
    return recon, mu, log_var, z


# -----------------------------------------------------------------------------
# Pure-JAX reference + self-test
# -----------------------------------------------------------------------------
def _reference(x, cond, p, features):
    """Pure-JAX reference of the eval-mode CVAE forward."""
    xc = jnp.concatenate([x, cond], axis=1)
    h1 = jnp.maximum(xc @ p["w1"] + p["b1"], 0.0)
    mlv = h1 @ p["w2"] + p["b2"]
    mu, log_var = mlv[:, :features], mlv[:, features:]
    z = mu
    zc = jnp.concatenate([z, cond], axis=1)
    h2 = jnp.maximum(zc @ p["w3"] + p["b3"], 0.0)
    recon = jnp.maximum(h2 @ p["w4"] + p["b4"], 0.0)
    return recon, mu, log_var, zc


if __name__ == "__main__":
    B, INPUT_DIM, MID_DIM, FEATURES, NUM_CLASSES = 8, 32, 64, 16, 8

    key = jax.random.PRNGKey(0)
    kx, kc, kp = jax.random.split(key, 3)

    x = jax.random.normal(kx, (B, INPUT_DIM), jnp.float32)
    cond_idx = jax.random.randint(kc, (B,), 0, NUM_CLASSES)
    condition = jax.nn.one_hot(cond_idx, NUM_CLASSES, dtype=jnp.float32)

    params = init_params(kp, INPUT_DIM, MID_DIM, FEATURES, NUM_CLASSES)
    r_ref, mu_ref, lv_ref, z_ref = _reference(x, condition, params, FEATURES)

    # --- f32 operands (exactness check vs pure-JAX reference) ---
    prepared, dims = prepare_params(params, INPUT_DIM, MID_DIM, FEATURES,
                                    NUM_CLASSES, compute_dtype=jnp.float32)
    recon, mu, log_var, z = jax.block_until_ready(
        cvae_forward(x, condition, prepared, dims))
    assert jnp.allclose(recon, r_ref, atol=1e-5)
    assert jnp.allclose(mu, mu_ref, atol=1e-5)
    assert jnp.allclose(log_var, lv_ref, atol=1e-5)
    assert jnp.allclose(z, z_ref, atol=1e-5)

    # --- bf16 matmul operands, f32 accumulation/outputs (MXU-native path) ---
    prepared_bf, dims_bf = prepare_params(params, INPUT_DIM, MID_DIM, FEATURES,
                                          NUM_CLASSES, compute_dtype=jnp.bfloat16)
    recon_b, mu_b, lv_b, z_b = jax.block_until_ready(
        cvae_forward(x, condition, prepared_bf, dims_bf))
    assert jnp.allclose(recon_b, r_ref, atol=5e-2, rtol=5e-2)
    assert jnp.allclose(mu_b, mu_ref, atol=5e-2, rtol=5e-2)
    assert jnp.allclose(lv_b, lv_ref, atol=5e-2, rtol=5e-2)

    print("KERNEL_OK")
</pallas_src>

<mosaic_0001>
module attributes {stable_mosaic.version = 11 : i64} {
  func.func @_cvae_kernel(%arg0: i32, %arg1: memref<8x128xf32, #tpu.memory_space<vmem>>, %arg2: memref<128x128xf32, #tpu.memory_space<vmem>>, %arg3: memref<1x128xf32, #tpu.memory_space<vmem>>, %arg4: memref<128x128xf32, #tpu.memory_space<vmem>>, %arg5: memref<1x128xf32, #tpu.memory_space<vmem>>, %arg6: memref<128x128xf32, #tpu.memory_space<vmem>>, %arg7: memref<128x128xf32, #tpu.memory_space<vmem>>, %arg8: memref<1x128xf32, #tpu.memory_space<vmem>>, %arg9: memref<128x128xf32, #tpu.memory_space<vmem>>, %arg10: memref<1x128xf32, #tpu.memory_space<vmem>>, %arg11: memref<8x128xf32, #tpu.memory_space<vmem>>) attributes {dimension_semantics = [#tpu.dimension_semantics<parallel>], iteration_bounds = array<i64: 1>, scalar_prefetch = 0 : i64, scratch_operands = 0 : i64, tpu.core_type = #tpu.core_type<tc>, window_params = [{transform_indices = @transform_0, window_bounds = array<i64: 8, 128>}, {pipeline_mode = #tpu.pipeline_mode<synchronous>, transform_indices = @transform_1, window_bounds = array<i64: 128, 128>}, {pipeline_mode = #tpu.pipeline_mode<synchronous>, transform_indices = @transform_2, window_bounds = array<i64: 1, 128>}, {pipeline_mode = #tpu.pipeline_mode<synchronous>, transform_indices = @transform_3, window_bounds = array<i64: 128, 128>}, {pipeline_mode = #tpu.pipeline_mode<synchronous>, transform_indices = @transform_4, window_bounds = array<i64: 1, 128>}, {pipeline_mode = #tpu.pipeline_mode<synchronous>, transform_indices = @transform_5, window_bounds = array<i64: 128, 128>}, {pipeline_mode = #tpu.pipeline_mode<synchronous>, transform_indices = @transform_6, window_bounds = array<i64: 128, 128>}, {pipeline_mode = #tpu.pipeline_mode<synchronous>, transform_indices = @transform_7, window_bounds = array<i64: 1, 128>}, {pipeline_mode = #tpu.pipeline_mode<synchronous>, transform_indices = @transform_8, window_bounds = array<i64: 128, 128>}, {pipeline_mode = #tpu.pipeline_mode<synchronous>, transform_indices = @transform_9, window_bounds = array<i64: 1, 128>}, {transform_indices = @transform_10, window_bounds = array<i64: 8, 128>}]} {
    %c0 = arith.constant 0 : index
    %c0_0 = arith.constant 0 : index
    %0 = vector.load %arg1[%c0, %c0_0] : memref<8x128xf32, #tpu.memory_space<vmem>>, vector<8x128xf32>
    %c0_1 = arith.constant 0 : index
    %c0_2 = arith.constant 0 : index
    %1 = vector.load %arg2[%c0_1, %c0_2] : memref<128x128xf32, #tpu.memory_space<vmem>>, vector<128x128xf32>
    %cst = arith.constant dense<0.000000e+00> : vector<8x128xf32>
    %2 = tpu.matmul %0, %1, %cst {dimension_numbers = #tpu.dot_dimension_numbers<[1], [0], [0], [1], [0, 0, 1, 1], [], []>} : vector<8x128xf32>, vector<128x128xf32>, vector<8x128xf32> -> vector<8x128xf32>
    %c0_3 = arith.constant 0 : index
    %c0_4 = arith.constant 0 : index
    %3 = vector.load %arg3[%c0_3, %c0_4] : memref<1x128xf32, #tpu.memory_space<vmem>>, vector<1x128xf32>
    %4 = vector.broadcast %3 : vector<1x128xf32> to vector<8x128xf32>
    %5 = arith.addf %2, %4 : vector<8x128xf32>
    %cst_5 = arith.constant 0.000000e+00 : f32
    %6 = vector.broadcast %cst_5 : f32 to vector<8x128xf32>
    %7 = arith.maximumf %5, %6 : vector<8x128xf32>
    %c0_6 = arith.constant 0 : index
    %c0_7 = arith.constant 0 : index
    %8 = vector.load %arg4[%c0_6, %c0_7] : memref<128x128xf32, #tpu.memory_space<vmem>>, vector<128x128xf32>
    %cst_8 = arith.constant dense<0.000000e+00> : vector<8x128xf32>
    %9 = tpu.matmul %7, %8, %cst_8 {dimension_numbers = #tpu.dot_dimension_numbers<[1], [0], [0], [1], [0, 0, 1, 1], [], []>} : vector<8x128xf32>, vector<128x128xf32>, vector<8x128xf32> -> vector<8x128xf32>
    %c0_9 = arith.constant 0 : index
    %c0_10 = arith.constant 0 : index
    %10 = vector.load %arg5[%c0_9, %c0_10] : memref<1x128xf32, #tpu.memory_space<vmem>>, vector<1x128xf32>
    %11 = vector.broadcast %10 : vector<1x128xf32> to vector<8x128xf32>
    %12 = arith.addf %9, %11 : vector<8x128xf32>
    %c0_11 = arith.constant 0 : index
    %c0_12 = arith.constant 0 : index
    %13 = vector.load %arg6[%c0_11, %c0_12] : memref<128x128xf32, #tpu.memory_space<vmem>>, vector<128x128xf32>
    %cst_13 = arith.constant dense<0.000000e+00> : vector<8x128xf32>
    %14 = tpu.matmul %12, %13, %cst_13 {dimension_numbers = #tpu.dot_dimension_numbers<[1], [0], [0], [1], [0, 0, 1, 1], [], []>} : vector<8x128xf32>, vector<128x128xf32>, vector<8x128xf32> -> vector<8x128xf32>
    %c0_14 = arith.constant 0 : index
    %c0_15 = arith.constant 0 : index
    %15 = vector.load %arg7[%c0_14, %c0_15] : memref<128x128xf32, #tpu.memory_space<vmem>>, vector<128x128xf32>
    %cst_16 = arith.constant dense<0.000000e+00> : vector<8x128xf32>
    %16 = tpu.matmul %0, %15, %cst_16 {dimension_numbers = #tpu.dot_dimension_numbers<[1], [0], [0], [1], [0, 0, 1, 1], [], []>} : vector<8x128xf32>, vector<128x128xf32>, vector<8x128xf32> -> vector<8x128xf32>
    %17 = arith.addf %14, %16 : vector<8x128xf32>
    %c0_17 = arith.constant 0 : index
    %c0_18 = arith.constant 0 : index
    %18 = vector.load %arg8[%c0_17, %c0_18] : memref<1x128xf32, #tpu.memory_space<vmem>>, vector<1x128xf32>
    %19 = vector.broadcast %18 : vector<1x128xf32> to vector<8x128xf32>
    %20 = arith.addf %17, %19 : vector<8x128xf32>
    %cst_19 = arith.constant 0.000000e+00 : f32
    %21 = vector.broadcast %cst_19 : f32 to vector<8x128xf32>
    %22 = arith.maximumf %20, %21 : vector<8x128xf32>
    %c0_20 = arith.constant 0 : index
    %c0_21 = arith.constant 0 : index
    %23 = vector.load %arg9[%c0_20, %c0_21] : memref<128x128xf32, #tpu.memory_space<vmem>>, vector<128x128xf32>
    %cst_22 = arith.constant dense<0.000000e+00> : vector<8x128xf32>
    %24 = tpu.matmul %22, %23, %cst_22 {dimension_numbers = #tpu.dot_dimension_numbers<[1], [0], [0], [1], [0, 0, 1, 1], [], []>} : vector<8x128xf32>, vector<128x128xf32>, vector<8x128xf32> -> vector<8x128xf32>
    %c0_23 = arith.constant 0 : index
    %c0_24 = arith.constant 0 : index
    %25 = vector.load %arg10[%c0_23, %c0_24] : memref<1x128xf32, #tpu.memory_space<vmem>>, vector<1x128xf32>
    %26 = vector.broadcast %25 : vector<1x128xf32> to vector<8x128xf32>
    %27 = arith.addf %24, %26 : vector<8x128xf32>
    %cst_25 = arith.constant 0.000000e+00 : f32
    %28 = vector.broadcast %cst_25 : f32 to vector<8x128xf32>
    %29 = arith.maximumf %27, %28 : vector<8x128xf32>
    %30 = arith.addf %29, %12 : vector<8x128xf32>
    %c0_26 = arith.constant 0 : index
    %c0_27 = arith.constant 0 : index
    %31 = vector.load %arg11[%c0_26, %c0_27] : memref<8x128xf32, #tpu.memory_space<vmem>>, vector<8x128xf32>
    tpu.vector_store %arg11[%c0_26, %c0_27], %30 {strides = array<i32>} : memref<8x128xf32, #tpu.memory_space<vmem>>, vector<8x128xf32>,
    return
  }
  func.func @transform_0(%arg0: i32) -> (i32, i32) {
    %c0_i32 = arith.constant 0 : i32
    %c0_i32_0 = arith.constant 0 : i32
    return %arg0, %c0_i32 : i32, i32
  }
  func.func @transform_1(%arg0: i32) -> (i32, i32) {
    %c0_i32 = arith.constant 0 : i32
    %c0_i32_0 = arith.constant 0 : i32
    %c0_i32_1 = arith.constant 0 : i32
    return %c0_i32, %c0_i32_0 : i32, i32
  }
  func.func @transform_2(%arg0: i32) -> (i32, i32) {
    %c0_i32 = arith.constant 0 : i32
    %c0_i32_0 = arith.constant 0 : i32
    %c0_i32_1 = arith.constant 0 : i32
    return %c0_i32, %c0_i32_0 : i32, i32
  }
  func.func @transform_3(%arg0: i32) -> (i32, i32) {
    %c0_i32 = arith.constant 0 : i32
    %c0_i32_0 = arith.constant 0 : i32
    %c0_i32_1 = arith.constant 0 : i32
    return %c0_i32, %c0_i32_0 : i32, i32
  }
  func.func @transform_4(%arg0: i32) -> (i32, i32) {
    %c0_i32 = arith.constant 0 : i32
    %c0_i32_0 = arith.constant 0 : i32
    %c0_i32_1 = arith.constant 0 : i32
    return %c0_i32, %c0_i32_0 : i32, i32
  }
  func.func @transform_5(%arg0: i32) -> (i32, i32) {
    %c0_i32 = arith.constant 0 : i32
    %c0_i32_0 = arith.constant 0 : i32
    %c0_i32_1 = arith.constant 0 : i32
    return %c0_i32, %c0_i32_0 : i32, i32
  }
  func.func @transform_6(%arg0: i32) -> (i32, i32) {
    %c0_i32 = arith.constant 0 : i32
    %c0_i32_0 = arith.constant 0 : i32
    %c0_i32_1 = arith.constant 0 : i32
    return %c0_i32, %c0_i32_0 : i32, i32
  }
  func.func @transform_7(%arg0: i32) -> (i32, i32) {
    %c0_i32 = arith.constant 0 : i32
    %c0_i32_0 = arith.constant 0 : i32
    %c0_i32_1 = arith.constant 0 : i32
    return %c0_i32, %c0_i32_0 : i32, i32
  }
  func.func @transform_8(%arg0: i32) -> (i32, i32) {
    %c0_i32 = arith.constant 0 : i32
    %c0_i32_0 = arith.constant 0 : i32
    %c0_i32_1 = arith.constant 0 : i32
    return %c0_i32, %c0_i32_0 : i32, i32
  }
  func.func @transform_9(%arg0: i32) -> (i32, i32) {
    %c0_i32 = arith.constant 0 : i32
    %c0_i32_0 = arith.constant 0 : i32
    %c0_i32_1 = arith.constant 0 : i32
    return %c0_i32, %c0_i32_0 : i32, i32
  }
  func.func @transform_10(%arg0: i32) -> (i32, i32) {
    %c0_i32 = arith.constant 0 : i32
    %c0_i32_0 = arith.constant 0 : i32
    return %arg0, %c0_i32 : i32, i32
  }
}

</mosaic_0001>

<llo_original>
// kernel: tpu_custom_call.1
$region0: #{tpu_custom_call.1}
  #allocation0 [shape = 'u32[]', space=smem, size = 0x4, offset = 0x4, fixed_abs, tag = 'smem constant byte address 0x4 - core index']
  #allocation1 [shape = 'u32[144,128]{1,0:T(1,128)}', space=vmem, size = 0x12000, scoped, tag = 'internal scratch']
  %s0 = inlined_call_operand.hbm [shape: f32[8,128], index: 0, kind: input, shape index: {}]
  %s1 = inlined_call_operand.hbm [shape: f32[128,128], index: 1, kind: input, shape index: {}]
  %s2 = inlined_call_operand.vmem [shape: f32[1,128], index: 2, kind: input, shape index: {}]
  %s3 = inlined_call_operand.hbm [shape: f32[128,128], index: 3, kind: input, shape index: {}]
  %s4 = inlined_call_operand.vmem [shape: f32[1,128], index: 4, kind: input, shape index: {}]
  %s5 = inlined_call_operand.hbm [shape: f32[128,128], index: 5, kind: input, shape index: {}]
  %s6 = inlined_call_operand.hbm [shape: f32[128,128], index: 6, kind: input, shape index: {}]
  %s7 = inlined_call_operand.vmem [shape: f32[1,128], index: 7, kind: input, shape index: {}]
  %s8 = inlined_call_operand.hbm [shape: f32[128,128], index: 8, kind: input, shape index: {}]
  %s9 = inlined_call_operand.vmem [shape: f32[1,128], index: 9, kind: input, shape index: {}]
  %s10 = inlined_call_operand.hbm [shape: f32[8,128], index: 10, kind: output, shape index: {}]
  %s11 = sld [smem:[#allocation0]]
  $region74: #{tpu_custom_call.1} parent=0
    _
  %s13 = ssub.s32 1, %s11
  %s14 = scalar_select 0, %s13, %s11
  $region1: #{tpu_custom_call.1} parent=0
    #allocation2 [shape = 'u8[4096]{0}', space=vmem, size = 0x1000, scoped, tag = 'input window, operand 0, single buffered']
    #allocation3 [shape = 's32[1]{0}', space=sflag, size = 0x4, scoped, tag = 'scoped memory for tpu_custom_call.1']
    #allocation4 [shape = 's32[1]{0}', space=sflag, size = 0x4, scoped, tag = 'scoped memory for tpu_custom_call.1']
    #allocation5 [shape = 'u8[65536]{0}', space=vmem, size = 0x10000, scoped, tag = 'input window, operand 1, single buffered']
    #allocation6 [shape = 's32[1]{0}', space=sflag, size = 0x4, scoped, tag = 'scoped memory for tpu_custom_call.1']
    #allocation7 [shape = 'u8[65536]{0}', space=vmem, size = 0x10000, scoped, tag = 'input window, operand 3, single buffered']
    #allocation8 [shape = 'u8[65536]{0}', space=vmem, size = 0x10000, scoped, tag = 'input window, operand 5, single buffered']
    #allocation9 [shape = 's32[1]{0}', space=sflag, size = 0x4, scoped, tag = 'scoped memory for tpu_custom_call.1']
    #allocation10 [shape = 'u8[65536]{0}', space=vmem, size = 0x10000, scoped, tag = 'input window, operand 6, single buffered']
    #allocation11 [shape = 'u8[65536]{0}', space=vmem, size = 0x10000, scoped, tag = 'input window, operand 8, single buffered']
    #allocation12 [shape = 's32[1]{0}', space=sflag, size = 0x4, scoped, tag = 'scoped memory for tpu_custom_call.1']
    #allocation13 [shape = 'u8[4096]{0}', space=vmem, size = 0x1000, scoped, tag = 'output window, operand 0, single buffered']
    %15 = vsyncpa [#allocation3], 0
    %16 = vsyncpa [#allocation6], 0
    %17 = vsyncpa [#allocation9], 0
    %18 = vsyncpa [#allocation12], 0
    %19 = vsyncpa [#allocation4], 0
    // Predicated region
    $region2: #{tpu_custom_call.1} parent=1 // pred_check
      _
    $region3: #{tpu_custom_call.1} parent=1 // pred_check_branch
      %21 = sbr.rel (0) target = $region5
    $region4: #{tpu_custom_call.1} parent=1 // pred_region
      %s23 = ssub.s32 128, 128
      %24 = vsyncadd [#allocation3], %s23
      %s26 = sshll.u32 [#allocation2], 4
      %s27 = int_to_ptr.vmem [resolvable:$true] %s26
      %29 = dma.hbm_to_vmem [thread:$0]  %s0, 128, %s27, [#allocation3]
    $region5: #{tpu_custom_call.1} parent=1 // pred_fallthru
      _
    // Predicated region
    $region6: #{tpu_custom_call.1} parent=1 // pred_check
      _
    $region7: #{tpu_custom_call.1} parent=1 // pred_check_branch
      %31 = sbr.rel (0) target = $region9
    $region8: #{tpu_custom_call.1} parent=1 // pred_region
      %s33 = ssub.s32 2048, 2048
      %34 = vsyncadd [#allocation6], %s33
      %s35 = sshll.u32 [#allocation5], 4
      %s36 = int_to_ptr.vmem [resolvable:$true] %s35
      %41 = dma.hbm_to_vmem [thread:$0]  %s1, 2048, %s36, [#allocation6], 128, 128, 8
    $region9: #{tpu_custom_call.1} parent=1 // pred_fallthru
      _
    // Predicated region
    $region10: #{tpu_custom_call.1} parent=1 // pred_check
      _
    $region11: #{tpu_custom_call.1} parent=1 // pred_check_branch
      %43 = sbr.rel (0) target = $region13
    $region12: #{tpu_custom_call.1} parent=1 // pred_region
      _
    $region13: #{tpu_custom_call.1} parent=1 // pred_fallthru
      _
    // Predicated region
    $region14: #{tpu_custom_call.1} parent=1 // pred_check
      _
    $region15: #{tpu_custom_call.1} parent=1 // pred_check_branch
      %45 = sbr.rel (0) target = $region17
    $region16: #{tpu_custom_call.1} parent=1 // pred_region
      %s47 = ssub.s32 2048, 2048
      %48 = vsyncadd [#allocation6], %s47
      %s49 = sshll.u32 [#allocation7], 4
      %s50 = int_to_ptr.vmem [resolvable:$true] %s49
      %55 = dma.hbm_to_vmem [thread:$0]  %s3, 2048, %s50, [#allocation6], 128, 128, 8
    $region17: #{tpu_custom_call.1} parent=1 // pred_fallthru
      _
    // Predicated region
    $region18: #{tpu_custom_call.1} parent=1 // pred_check
      _
    $region19: #{tpu_custom_call.1} parent=1 // pred_check_branch
      %57 = sbr.rel (0) target = $region21
    $region20: #{tpu_custom_call.1} parent=1 // pred_region
      _
    $region21: #{tpu_custom_call.1} parent=1 // pred_fallthru
      _
    // Predicated region
    $region22: #{tpu_custom_call.1} parent=1 // pred_check
      _
    $region23: #{tpu_custom_call.1} parent=1 // pred_check_branch
      %59 = sbr.rel (0) target = $region25
    $region24: #{tpu_custom_call.1} parent=1 // pred_region
      %s61 = ssub.s32 2048, 2048
      %62 = vsyncadd [#allocation9], %s61
      %s63 = sshll.u32 [#allocation8], 4
      %s64 = int_to_ptr.vmem [resolvable:$true] %s63
      %69 = dma.hbm_to_vmem [thread:$0]  %s5, 2048, %s64, [#allocation9], 128, 128, 8
    $region25: #{tpu_custom_call.1} parent=1 // pred_fallthru
      _
    // Predicated region
    $region26: #{tpu_custom_call.1} parent=1 // pred_check
      _
    $region27: #{tpu_custom_call.1} parent=1 // pred_check_branch
      %71 = sbr.rel (0) target = $region29
    $region28: #{tpu_custom_call.1} parent=1 // pred_region
      %s73 = ssub.s32 2048, 2048
      %74 = vsyncadd [#allocation9], %s73
      %s75 = sshll.u32 [#allocation10], 4
      %s76 = int_to_ptr.vmem [resolvable:$true] %s75
      %81 = dma.hbm_to_vmem [thread:$0]  %s6, 2048, %s76, [#allocation9], 128, 128, 8
    $region29: #{tpu_custom_call.1} parent=1 // pred_fallthru
      _
    // Predicated region
    $region30: #{tpu_custom_call.1} parent=1 // pred_check
      _
    $region31: #{tpu_custom_call.1} parent=1 // pred_check_branch
      %83 = sbr.rel (0) target = $region33
    $region32: #{tpu_custom_call.1} parent=1 // pred_region
      _
    $region33: #{tpu_custom_call.1} parent=1 // pred_fallthru
      _
    // Predicated region
    $region34: #{tpu_custom_call.1} parent=1 // pred_check
      _
    $region35: #{tpu_custom_call.1} parent=1 // pred_check_branch
      %85 = sbr.rel (0) target = $region37
    $region36: #{tpu_custom_call.1} parent=1 // pred_region
      %s87 = ssub.s32 2048, 2048
      %88 = vsyncadd [#allocation12], %s87
      %s89 = sshll.u32 [#allocation11], 4
      %s90 = int_to_ptr.vmem [resolvable:$true] %s89
      %95 = dma.hbm_to_vmem [thread:$0]  %s8, 2048, %s90, [#allocation12], 128, 128, 8
    $region37: #{tpu_custom_call.1} parent=1 // pred_fallthru
      _
    // Predicated region
    $region38: #{tpu_custom_call.1} parent=1 // pred_check
      _
    $region39: #{tpu_custom_call.1} parent=1 // pred_check_branch
      %97 = sbr.rel (0) target = $region41
    $region40: #{tpu_custom_call.1} parent=1 // pred_region
      _
    $region41: #{tpu_custom_call.1} parent=1 // pred_fallthru
      _
    // Predicated region
    $region42: #{tpu_custom_call.1} parent=1 // pred_check
      _
    $region43: #{tpu_custom_call.1} parent=1 // pred_check_branch
      %99 = sbr.rel (0) target = $region45
    $region44: #{tpu_custom_call.1} parent=1 // pred_region
      %100 = dma.done [#allocation3], 128
    $region45: #{tpu_custom_call.1} parent=1 // pred_fallthru
      _
    // Predicated region
    $region46: #{tpu_custom_call.1} parent=1 // pred_check
      _
    $region47: #{tpu_custom_call.1} parent=1 // pred_check_branch
      %102 = sbr.rel (0) target = $region49
    $region48: #{tpu_custom_call.1} parent=1 // pred_region
      %103 = dma.done [#allocation6], 2048
    $region49: #{tpu_custom_call.1} parent=1 // pred_fallthru
      _
    // Predicated region
    $region50: #{tpu_custom_call.1} parent=1 // pred_check
      _
    $region51: #{tpu_custom_call.1} parent=1 // pred_check_branch
      %105 = sbr.rel (0) target = $region53
    $region52: #{tpu_custom_call.1} parent=1 // pred_region
      %106 = dma.done [#allocation6], 2048
    $region53: #{tpu_custom_call.1} parent=1 // pred_fallthru
      _
    // Predicated region
    $region54: #{tpu_custom_call.1} parent=1 // pred_check
      _
    $region55: #{tpu_custom_call.1} parent=1 // pred_check_branch
      %108 = sbr.rel (0) target = $region57
    $region56: #{tpu_custom_call.1} parent=1 // pred_region
      %109 = dma.done [#allocation9], 2048
    $region57: #{tpu_custom_call.1} parent=1 // pred_fallthru
      _
    // Predicated region
    $region58: #{tpu_custom_call.1} parent=1 // pred_check
      _
    $region59: #{tpu_custom_call.1} parent=1 // pred_check_branch
      %111 = sbr.rel (0) target = $region61
    $region60: #{tpu_custom_call.1} parent=1 // pred_region
      %112 = dma.done [#allocation9], 2048
    $region61: #{tpu_custom_call.1} parent=1 // pred_fallthru
      _
    // Predicated region
    $region62: #{tpu_custom_call.1} parent=1 // pred_check
      _
    $region63: #{tpu_custom_call.1} parent=1 // pred_check_branch
      %114 = sbr.rel (0) target = $region65
    $region64: #{tpu_custom_call.1} parent=1 // pred_region
      %115 = dma.done [#allocation12], 2048
    $region65: #{tpu_custom_call.1} parent=1 // pred_fallthru
      _
    %v116 = vld [vmem:[#allocation2] sm:$0xff]
    %v117 = vld [vmem:[#allocation5] sm:$0xff]
    %v118 = vld [vmem:[#allocation5 + $0x8] sm:$0xff]
    %v119 = vld [vmem:[#allocation5 + $0x10] sm:$0xff]
    %v120 = vld [vmem:[#allocation5 + $0x18] sm:$0xff]
    %v121 = vld [vmem:[#allocation5 + $0x20] sm:$0xff]
    %v122 = vld [vmem:[#allocation5 + $0x28] sm:$0xff]
    %v123 = vld [vmem:[#allocation5 + $0x30] sm:$0xff]
    %v124 = vld [vmem:[#allocation5 + $0x38] sm:$0xff]
    %v125 = vld [vmem:[#allocation5 + $0x40] sm:$0xff]
    %v126 = vld [vmem:[#allocation5 + $0x48] sm:$0xff]
    %v127 = vld [vmem:[#allocation5 + $0x50] sm:$0xff]
    %v128 = vld [vmem:[#allocation5 + $0x58] sm:$0xff]
    %v129 = vld [vmem:[#allocation5 + $0x60] sm:$0xff]
    %v130 = vld [vmem:[#allocation5 + $0x68] sm:$0xff]
    %v131 = vld [vmem:[#allocation5 + $0x70] sm:$0xff]
    %v132 = vld [vmem:[#allocation5 + $0x78] sm:$0xff]
    %v133 = vld [vmem:[%s2] sm:$0x1]
    %v135 = vlaneseq
    %v136 = vshrl.u32 %v135, 7
    %v137 = vsub.s32 0, %v136
    %v138 = vrot.slane %v133, %v137
    %140 = vmatprep.subr.mxu0 0.0
    %141 = vmatpush1.msra.mxu0 %v117
    %142 = vmatprep.subr.mxu0 0.0
    %143 = vmatpush1.msra.mxu0 %v118
    %144 = vmatprep.subr.mxu0 0.0
    %145 = vmatpush1.msra.mxu0 %v119
    %146 = vmatprep.subr.mxu0 0.0
    %147 = vmatpush1.msra.mxu0 %v120
    %148 = vmatprep.subr.mxu0 0.0
    %149 = vmatpush1.msra.mxu0 %v121
    %150 = vmatprep.subr.mxu0 0.0
    %151 = vmatpush1.msra.mxu0 %v122
    %152 = vmatprep.subr.mxu0 0.0
    %153 = vmatpush1.msra.mxu0 %v123
    %154 = vmatprep.subr.mxu0 0.0
    %155 = vmatpush1.msra.mxu0 %v124
    %156 = vmatprep.subr.mxu0 0.0
    %157 = vmatpush1.msra.mxu0 %v125
    %158 = vmatprep.subr.mxu0 0.0
    %159 = vmatpush1.msra.mxu0 %v126
    %160 = vmatprep.subr.mxu0 0.0
    %161 = vmatpush1.msra.mxu0 %v127
    %162 = vmatprep.subr.mxu0 0.0
    %163 = vmatpush1.msra.mxu0 %v128
    %164 = vmatprep.subr.mxu0 0.0
    %165 = vmatpush1.msra.mxu0 %v129
    %166 = vmatprep.subr.mxu0 0.0
    %167 = vmatpush1.msra.mxu0 %v130
    %168 = vmatprep.subr.mxu0 0.0
    %169 = vmatpush1.msra.mxu0 %v131
    %170 = vmatprep.subr.mxu0 0.0
    %171 = vmatpush1.msra.mxu0 %v132
    %172 = vmatprep.subr.mxu0 0.0
    %173 = vmatpush1.msra.mxu0 0.0
    %174 = vmatprep.subr.mxu0 0.0
    %175 = vmatpush1.msra.mxu0 0.0
    %176 = vmatprep.subr.mxu0 0.0
    %177 = vmatpush1.msra.mxu0 0.0
    %178 = vmatprep.subr.mxu0 0.0
    %179 = vmatpush1.msra.mxu0 0.0
    %180 = vmatprep.subr.mxu0 0.0
    %181 = vmatpush1.msra.mxu0 0.0
    %182 = vmatprep.subr.mxu0 0.0
    %183 = vmatpush1.msra.mxu0 0.0
    %184 = vmatprep.subr.mxu0 0.0
    %185 = vmatpush1.msra.mxu0 0.0
    %186 = vmatprep.subr.mxu0 0.0
    %187 = vmatpush1.msra.mxu0 0.0
    %188 = vmatprep.subr.mxu0 0.0
    %189 = vmatpush1.msra.mxu0 0.0
    %190 = vmatprep.subr.mxu0 0.0
    %191 = vmatpush1.msra.mxu0 0.0
    %192 = vmatprep.subr.mxu0 0.0
    %193 = vmatpush1.msra.mxu0 0.0
    %194 = vmatprep.subr.mxu0 0.0
    %195 = vmatpush1.msra.mxu0 0.0
    %196 = vmatprep.subr.mxu0 0.0
    %197 = vmatpush1.msra.mxu0 0.0
    %198 = vmatprep.subr.mxu0 0.0
    %199 = vmatpush1.msra.mxu0 0.0
    %200 = vmatprep.subr.mxu0 0.0
    %201 = vmatpush1.msra.mxu0 0.0
    %202 = vmatprep.subr.mxu0 0.0
    %203 = vmatpush1.msra.mxu0 0.0
    %204 = vmatprep.mubr.f32.mxu0 0.0
    %205 = vmatmul.mubr.f32.gmra.mrb[0].mxu0 %v116
    %v206 = vpop.f32.mrb[0].mxu0
    %v207 = vadd.f32 %v138, %v206
    %v208 = vpop.f32.mrb[0].mxu0
    %209 = vdwg.mxu0
    %v210 = vmax.f32 %v207, 0.0
    %v211 = vld [vmem:[#allocation7] sm:$0xff]
    %v212 = vld [vmem:[#allocation7 + $0x8] sm:$0xff]
    %v213 = vld [vmem:[#allocation7 + $0x10] sm:$0xff]
    %v214 = vld [vmem:[#allocation7 + $0x18] sm:$0xff]
    %v215 = vld [vmem:[#allocation7 + $0x20] sm:$0xff]
    %v216 = vld [vmem:[#allocation7 + $0x28] sm:$0xff]
    %v217 = vld [vmem:[#allocation7 + $0x30] sm:$0xff]
    %v218 = vld [vmem:[#allocation7 + $0x38] sm:$0xff]
    %v219 = vld [vmem:[#allocation7 + $0x40] sm:$0xff]
    %v220 = vld [vmem:[#allocation7 + $0x48] sm:$0xff]
    %v221 = vld [vmem:[#allocation7 + $0x50] sm:$0xff]
    %v222 = vld [vmem:[#allocation7 + $0x58] sm:$0xff]
    %v223 = vld [vmem:[#allocation7 + $0x60] sm:$0xff]
    %v224 = vld [vmem:[#allocation7 + $0x68] sm:$0xff]
    %v225 = vld [vmem:[#allocation7 + $0x70] sm:$0xff]
    %v226 = vld [vmem:[#allocation7 + $0x78] sm:$0xff]
    %v227 = vld [vmem:[%s4] sm:$0x1]
    %v229 = vlaneseq
    %v230 = vshrl.u32 %v229, 7
    %v231 = vsub.s32 0, %v230
    %v232 = vrot.slane %v227, %v231
    %234 = vmatprep.subr.mxu0 0.0
    %235 = vmatpush1.msra.mxu0 %v211
    %236 = vmatprep.subr.mxu0 0.0
    %237 = vmatpush1.msra.mxu0 %v212
    %238 = vmatprep.subr.mxu0 0.0
    %239 = vmatpush1.msra.mxu0 %v213
    %240 = vmatprep.subr.mxu0 0.0
    %241 = vmatpush1.msra.mxu0 %v214
    %242 = vmatprep.subr.mxu0 0.0
    %243 = vmatpush1.msra.mxu0 %v215
    %244 = vmatprep.subr.mxu0 0.0
    %245 = vmatpush1.msra.mxu0 %v216
    %246 = vmatprep.subr.mxu0 0.0
    %247 = vmatpush1.msra.mxu0 %v217
    %248 = vmatprep.subr.mxu0 0.0
    %249 = vmatpush1.msra.mxu0 %v218
    %250 = vmatprep.subr.mxu0 0.0
    %251 = vmatpush1.msra.mxu0 %v219
    %252 = vmatprep.subr.mxu0 0.0
    %253 = vmatpush1.msra.mxu0 %v220
    %254 = vmatprep.subr.mxu0 0.0
    %255 = vmatpush1.msra.mxu0 %v221
    %256 = vmatprep.subr.mxu0 0.0
    %257 = vmatpush1.msra.mxu0 %v222
    %258 = vmatprep.subr.mxu0 0.0
    %259 = vmatpush1.msra.mxu0 %v223
    %260 = vmatprep.subr.mxu0 0.0
    %261 = vmatpush1.msra.mxu0 %v224
    %262 = vmatprep.subr.mxu0 0.0
    %263 = vmatpush1.msra.mxu0 %v225
    %264 = vmatprep.subr.mxu0 0.0
    %265 = vmatpush1.msra.mxu0 %v226
    %266 = vmatprep.subr.mxu0 0.0
    %267 = vmatpush1.msra.mxu0 0.0
    %268 = vmatprep.subr.mxu0 0.0
    %269 = vmatpush1.msra.mxu0 0.0
    %270 = vmatprep.subr.mxu0 0.0
    %271 = vmatpush1.msra.mxu0 0.0
    %272 = vmatprep.subr.mxu0 0.0
    %273 = vmatpush1.msra.mxu0 0.0
    %274 = vmatprep.subr.mxu0 0.0
    %275 = vmatpush1.msra.mxu0 0.0
    %276 = vmatprep.subr.mxu0 0.0
    %277 = vmatpush1.msra.mxu0 0.0
    %278 = vmatprep.subr.mxu0 0.0
    %279 = vmatpush1.msra.mxu0 0.0
    %280 = vmatprep.subr.mxu0 0.0
    %281 = vmatpush1.msra.mxu0 0.0
    %282 = vmatprep.subr.mxu0 0.0
    %283 = vmatpush1.msra.mxu0 0.0
    %284 = vmatprep.subr.mxu0 0.0
    %285 = vmatpush1.msra.mxu0 0.0
    %286 = vmatprep.subr.mxu0 0.0
    %287 = vmatpush1.msra.mxu0 0.0
    %288 = vmatprep.subr.mxu0 0.0
    %289 = vmatpush1.msra.mxu0 0.0
    %290 = vmatprep.subr.mxu0 0.0
    %291 = vmatpush1.msra.mxu0 0.0
    %292 = vmatprep.subr.mxu0 0.0
    %293 = vmatpush1.msra.mxu0 0.0
    %294 = vmatprep.subr.mxu0 0.0
    %295 = vmatpush1.msra.mxu0 0.0
    %296 = vmatprep.subr.mxu0 0.0
    %297 = vmatpush1.msra.mxu0 0.0
    %298 = vmatprep.mubr.f32.mxu0 0.0
    %299 = vmatmul.mubr.f32.gmra.mrb[0].mxu0 %v210
    %v300 = vpop.f32.mrb[0].mxu0
    %v301 = vadd.f32 %v232, %v300
    %v302 = vpop.f32.mrb[0].mxu0
    %303 = vdwg.mxu0
    %v304 = vld [vmem:[#allocation8] sm:$0xff]
    %v305 = vld [vmem:[#allocation8 + $0x8] sm:$0xff]
    %v306 = vld [vmem:[#allocation8 + $0x10] sm:$0xff]
    %v307 = vld [vmem:[#allocation8 + $0x18] sm:$0xff]
    %v308 = vld [vmem:[#allocation8 + $0x20] sm:$0xff]
    %v309 = vld [vmem:[#allocation8 + $0x28] sm:$0xff]
    %v310 = vld [vmem:[#allocation8 + $0x30] sm:$0xff]
    %v311 = vld [vmem:[#allocation8 + $0x38] sm:$0xff]
    %v312 = vld [vmem:[#allocation8 + $0x40] sm:$0xff]
    %v313 = vld [vmem:[#allocation8 + $0x48] sm:$0xff]
    %v314 = vld [vmem:[#allocation8 + $0x50] sm:$0xff]
    %v315 = vld [vmem:[#allocation8 + $0x58] sm:$0xff]
    %v316 = vld [vmem:[#allocation8 + $0x60] sm:$0xff]
    %v317 = vld [vmem:[#allocation8 + $0x68] sm:$0xff]
    %v318 = vld [vmem:[#allocation8 + $0x70] sm:$0xff]
    %v319 = vld [vmem:[#allocation8 + $0x78] sm:$0xff]
    %v320 = vld [vmem:[#allocation10] sm:$0xff]
    %v321 = vld [vmem:[#allocation10 + $0x8] sm:$0xff]
    %v322 = vld [vmem:[#allocation10 + $0x10] sm:$0xff]
    %v323 = vld [vmem:[#allocation10 + $0x18] sm:$0xff]
    %v324 = vld [vmem:[#allocation10 + $0x20] sm:$0xff]
    %v325 = vld [vmem:[#allocation10 + $0x28] sm:$0xff]
    %v326 = vld [vmem:[#allocation10 + $0x30] sm:$0xff]
    %v327 = vld [vmem:[#allocation10 + $0x38] sm:$0xff]
    %v328 = vld [vmem:[#allocation10 + $0x40] sm:$0xff]
    %v329 = vld [vmem:[#allocation10 + $0x48] sm:$0xff]
    %v330 = vld [vmem:[#allocation10 + $0x50] sm:$0xff]
    %v331 = vld [vmem:[#allocation10 + $0x58] sm:$0xff]
    %v332 = vld [vmem:[#allocation10 + $0x60] sm:$0xff]
    %v333 = vld [vmem:[#allocation10 + $0x68] sm:$0xff]
    %v334 = vld [vmem:[#allocation10 + $0x70] sm:$0xff]
    %v335 = vld [vmem:[#allocation10 + $0x78] sm:$0xff]
    %336 = vmatprep.subr.mxu0 0.0
    %337 = vmatpush1.msra.mxu0 %v320
    %338 = vmatprep.subr.mxu0 0.0
    %339 = vmatpush1.msra.mxu0 %v321
    %340 = vmatprep.subr.mxu0 0.0
    %341 = vmatpush1.msra.mxu0 %v322
    %342 = vmatprep.subr.mxu0 0.0
    %343 = vmatpush1.msra.mxu0 %v323
    %344 = vmatprep.subr.mxu0 0.0
    %345 = vmatpush1.msra.mxu0 %v324
    %346 = vmatprep.subr.mxu0 0.0
    %347 = vmatpush1.msra.mxu0 %v325
    %348 = vmatprep.subr.mxu0 0.0
    %349 = vmatpush1.msra.mxu0 %v326
    %350 = vmatprep.subr.mxu0 0.0
    %351 = vmatpush1.msra.mxu0 %v327
    %352 = vmatprep.subr.mxu0 0.0
    %353 = vmatpush1.msra.mxu0 %v328
    %354 = vmatprep.subr.mxu0 0.0
    %355 = vmatpush1.msra.mxu0 %v329
    %356 = vmatprep.subr.mxu0 0.0
    %357 = vmatpush1.msra.mxu0 %v330
    %358 = vmatprep.subr.mxu0 0.0
    %359 = vmatpush1.msra.mxu0 %v331
    %360 = vmatprep.subr.mxu0 0.0
    %361 = vmatpush1.msra.mxu0 %v332
    %362 = vmatprep.subr.mxu0 0.0
    %363 = vmatpush1.msra.mxu0 %v333
    %364 = vmatprep.subr.mxu0 0.0
    %365 = vmatpush1.msra.mxu0 %v334
    %366 = vmatprep.subr.mxu0 0.0
    %367 = vmatpush1.msra.mxu0 %v335
    %368 = vmatprep.subr.mxu0 0.0
    %369 = vmatpush1.msra.mxu0 0.0
    %370 = vmatprep.subr.mxu0 0.0
    %371 = vmatpush1.msra.mxu0 0.0
    %372 = vmatprep.subr.mxu0 0.0
    %373 = vmatpush1.msra.mxu0 0.0
    %374 = vmatprep.subr.mxu0 0.0
    %375 = vmatpush1.msra.mxu0 0.0
    %376 = vmatprep.subr.mxu0 0.0
    %377 = vmatpush1.msra.mxu0 0.0
    %378 = vmatprep.subr.mxu0 0.0
    %379 = vmatpush1.msra.mxu0 0.0
    %380 = vmatprep.subr.mxu0 0.0
    %381 = vmatpush1.msra.mxu0 0.0
    %382 = vmatprep.subr.mxu0 0.0
    %383 = vmatpush1.msra.mxu0 0.0
    %384 = vmatprep.subr.mxu0 0.0
    %385 = vmatpush1.msra.mxu0 0.0
    %386 = vmatprep.subr.mxu0 0.0
    %387 = vmatpush1.msra.mxu0 0.0
    %388 = vmatprep.subr.mxu0 0.0
    %389 = vmatpush1.msra.mxu0 0.0
    %390 = vmatprep.subr.mxu0 0.0
    %391 = vmatpush1.msra.mxu0 0.0
    %392 = vmatprep.subr.mxu0 0.0
    %393 = vmatpush1.msra.mxu0 0.0
    %394 = vmatprep.subr.mxu0 0.0
    %395 = vmatpush1.msra.mxu0 0.0
    %396 = vmatprep.subr.mxu0 0.0
    %397 = vmatpush1.msra.mxu0 0.0
    %398 = vmatprep.subr.mxu0 0.0
    %399 = vmatpush1.msra.mxu0 0.0
    %400 = vmatprep.mubr.f32.mxu0 0.0
    %401 = vmatmul.mubr.f32.gmra.mrb[0].mxu0 %v116
    %v402 = vpop.f32.mrb[0].mxu0
    %v403 = vadd.f32 0.0, %v402
    %v404 = vpop.f32.mrb[0].mxu0
    %405 = vdwg.mxu0
    %406 = vmatprep.subr.mxu0 0.0
    %407 = vmatpush1.msra.mxu0 %v304
    %408 = vmatprep.subr.mxu0 0.0
    %409 = vmatpush1.msra.mxu0 %v305
    %410 = vmatprep.subr.mxu0 0.0
    %411 = vmatpush1.msra.mxu0 %v306
    %412 = vmatprep.subr.mxu0 0.0
    %413 = vmatpush1.msra.mxu0 %v307
    %414 = vmatprep.subr.mxu0 0.0
    %415 = vmatpush1.msra.mxu0 %v308
    %416 = vmatprep.subr.mxu0 0.0
    %417 = vmatpush1.msra.mxu0 %v309
    %418 = vmatprep.subr.mxu0 0.0
    %419 = vmatpush1.msra.mxu0 %v310
    %420 = vmatprep.subr.mxu0 0.0
    %421 = vmatpush1.msra.mxu0 %v311
    %422 = vmatprep.subr.mxu0 0.0
    %423 = vmatpush1.msra.mxu0 %v312
    %424 = vmatprep.subr.mxu0 0.0
    %425 = vmatpush1.msra.mxu0 %v313
    %426 = vmatprep.subr.mxu0 0.0
    %427 = vmatpush1.msra.mxu0 %v314
    %428 = vmatprep.subr.mxu0 0.0
    %429 = vmatpush1.msra.mxu0 %v315
    %430 = vmatprep.subr.mxu0 0.0
    %431 = vmatpush1.msra.mxu0 %v316
    %432 = vmatprep.subr.mxu0 0.0
    %433 = vmatpush1.msra.mxu0 %v317
    %434 = vmatprep.subr.mxu0 0.0
    %435 = vmatpush1.msra.mxu0 %v318
    %436 = vmatprep.subr.mxu0 0.0
    %437 = vmatpush1.msra.mxu0 %v319
    %438 = vmatprep.subr.mxu0 0.0
    %439 = vmatpush1.msra.mxu0 0.0
    %440 = vmatprep.subr.mxu0 0.0
    %441 = vmatpush1.msra.mxu0 0.0
    %442 = vmatprep.subr.mxu0 0.0
    %443 = vmatpush1.msra.mxu0 0.0
    %444 = vmatprep.subr.mxu0 0.0
    %445 = vmatpush1.msra.mxu0 0.0
    %446 = vmatprep.subr.mxu0 0.0
    %447 = vmatpush1.msra.mxu0 0.0
    %448 = vmatprep.subr.mxu0 0.0
    %449 = vmatpush1.msra.mxu0 0.0
    %450 = vmatprep.subr.mxu0 0.0
    %451 = vmatpush1.msra.mxu0 0.0
    %452 = vmatprep.subr.mxu0 0.0
    %453 = vmatpush1.msra.mxu0 0.0
    %454 = vmatprep.subr.mxu0 0.0
    %455 = vmatpush1.msra.mxu0 0.0
    %456 = vmatprep.subr.mxu0 0.0
    %457 = vmatpush1.msra.mxu0 0.0
    %458 = vmatprep.subr.mxu0 0.0
    %459 = vmatpush1.msra.mxu0 0.0
    %460 = vmatprep.subr.mxu0 0.0
    %461 = vmatpush1.msra.mxu0 0.0
    %462 = vmatprep.subr.mxu0 0.0
    %463 = vmatpush1.msra.mxu0 0.0
    %464 = vmatprep.subr.mxu0 0.0
    %465 = vmatpush1.msra.mxu0 0.0
    %466 = vmatprep.subr.mxu0 0.0
    %467 = vmatpush1.msra.mxu0 0.0
    %468 = vmatprep.subr.mxu0 0.0
    %469 = vmatpush1.msra.mxu0 0.0
    %470 = vmatprep.mubr.f32.mxu0 0.0
    %471 = vmatmul.mubr.f32.gmra.mrb[0].mxu0 %v301
    %v472 = vpop.f32.mrb[0].mxu0
    %v473 = vadd.f32 %v403, %v472
    %v474 = vpop.f32.mrb[0].mxu0
    %475 = vdwg.mxu0
    %v476 = vld [vmem:[%s7] sm:$0x1]
    %v478 = vlaneseq
    %v479 = vshrl.u32 %v478, 7
    %v480 = vsub.s32 0, %v479
    %v481 = vrot.slane %v476, %v480
    %v483 = vadd.f32 %v473, %v481
    %v484 = vmax.f32 %v483, 0.0
    %v485 = vld [vmem:[#allocation11] sm:$0xff]
    %v486 = vld [vmem:[#allocation11 + $0x8] sm:$0xff]
    %v487 = vld [vmem:[#allocation11 + $0x10] sm:$0xff]
    %v488 = vld [vmem:[#allocation11 + $0x18] sm:$0xff]
    %v489 = vld [vmem:[#allocation11 + $0x20] sm:$0xff]
    %v490 = vld [vmem:[#allocation11 + $0x28] sm:$0xff]
    %v491 = vld [vmem:[#allocation11 + $0x30] sm:$0xff]
    %v492 = vld [vmem:[#allocation11 + $0x38] sm:$0xff]
    %v493 = vld [vmem:[#allocation11 + $0x40] sm:$0xff]
    %v494 = vld [vmem:[#allocation11 + $0x48] sm:$0xff]
    %v495 = vld [vmem:[#allocation11 + $0x50] sm:$0xff]
    %v496 = vld [vmem:[#allocation11 + $0x58] sm:$0xff]
    %v497 = vld [vmem:[#allocation11 + $0x60] sm:$0xff]
    %v498 = vld [vmem:[#allocation11 + $0x68] sm:$0xff]
    %v499 = vld [vmem:[#allocation11 + $0x70] sm:$0xff]
    %v500 = vld [vmem:[#allocation11 + $0x78] sm:$0xff]
    %v501 = vld [vmem:[%s9] sm:$0x1]
    %v503 = vlaneseq
    %v504 = vshrl.u32 %v503, 7
    %v505 = vsub.s32 0, %v504
    %v506 = vrot.slane %v501, %v505
    %508 = vmatprep.subr.mxu0 0.0
    %509 = vmatpush1.msra.mxu0 %v485
    %510 = vmatprep.subr.mxu0 0.0
    %511 = vmatpush1.msra.mxu0 %v486
    %512 = vmatprep.subr.mxu0 0.0
    %513 = vmatpush1.msra.mxu0 %v487
    %514 = vmatprep.subr.mxu0 0.0
    %515 = vmatpush1.msra.mxu0 %v488
    %516 = vmatprep.subr.mxu0 0.0
    %517 = vmatpush1.msra.mxu0 %v489
    %518 = vmatprep.subr.mxu0 0.0
    %519 = vmatpush1.msra.mxu0 %v490
    %520 = vmatprep.subr.mxu0 0.0
    %521 = vmatpush1.msra.mxu0 %v491
    %522 = vmatprep.subr.mxu0 0.0
    %523 = vmatpush1.msra.mxu0 %v492
    %524 = vmatprep.subr.mxu0 0.0
    %525 = vmatpush1.msra.mxu0 %v493
    %526 = vmatprep.subr.mxu0 0.0
    %527 = vmatpush1.msra.mxu0 %v494
    %528 = vmatprep.subr.mxu0 0.0
    %529 = vmatpush1.msra.mxu0 %v495
    %530 = vmatprep.subr.mxu0 0.0
    %531 = vmatpush1.msra.mxu0 %v496
    %532 = vmatprep.subr.mxu0 0.0
    %533 = vmatpush1.msra.mxu0 %v497
    %534 = vmatprep.subr.mxu0 0.0
    %535 = vmatpush1.msra.mxu0 %v498
    %536 = vmatprep.subr.mxu0 0.0
    %537 = vmatpush1.msra.mxu0 %v499
    %538 = vmatprep.subr.mxu0 0.0
    %539 = vmatpush1.msra.mxu0 %v500
    %540 = vmatprep.subr.mxu0 0.0
    %541 = vmatpush1.msra.mxu0 0.0
    %542 = vmatprep.subr.mxu0 0.0
    %543 = vmatpush1.msra.mxu0 0.0
    %544 = vmatprep.subr.mxu0 0.0
    %545 = vmatpush1.msra.mxu0 0.0
    %546 = vmatprep.subr.mxu0 0.0
    %547 = vmatpush1.msra.mxu0 0.0
    %548 = vmatprep.subr.mxu0 0.0
    %549 = vmatpush1.msra.mxu0 0.0
    %550 = vmatprep.subr.mxu0 0.0
    %551 = vmatpush1.msra.mxu0 0.0
    %552 = vmatprep.subr.mxu0 0.0
    %553 = vmatpush1.msra.mxu0 0.0
    %554 = vmatprep.subr.mxu0 0.0
    %555 = vmatpush1.msra.mxu0 0.0
    %556 = vmatprep.subr.mxu0 0.0
    %557 = vmatpush1.msra.mxu0 0.0
    %558 = vmatprep.subr.mxu0 0.0
    %559 = vmatpush1.msra.mxu0 0.0
    %560 = vmatprep.subr.mxu0 0.0
    %561 = vmatpush1.msra.mxu0 0.0
    %562 = vmatprep.subr.mxu0 0.0
    %563 = vmatpush1.msra.mxu0 0.0
    %564 = vmatprep.subr.mxu0 0.0
    %565 = vmatpush1.msra.mxu0 0.0
    %566 = vmatprep.subr.mxu0 0.0
    %567 = vmatpush1.msra.mxu0 0.0
    %568 = vmatprep.subr.mxu0 0.0
    %569 = vmatpush1.msra.mxu0 0.0
    %570 = vmatprep.subr.mxu0 0.0
    %571 = vmatpush1.msra.mxu0 0.0
    %572 = vmatprep.mubr.f32.mxu0 0.0
    %573 = vmatmul.mubr.f32.gmra.mrb[0].mxu0 %v484
    %v574 = vpop.f32.mrb[0].mxu0
    %v575 = vadd.f32 %v506, %v574
    %v576 = vpop.f32.mrb[0].mxu0
    %577 = vdwg.mxu0
    %v578 = vmax.f32 %v575, 0.0
    %v579 = vadd.f32 %v578, %v301
    %580 = vst [vmem:[#allocation13] sm:$0xff] %v579
    // Predicated region
    $region66: #{tpu_custom_call.1} parent=1 // pred_check
      _
    $region67: #{tpu_custom_call.1} parent=1 // pred_check_branch
      %582 = sbr.rel (0) target = $region69
    $region68: #{tpu_custom_call.1} parent=1 // pred_region
      %s584 = ssub.s32 128, 128
      %585 = vsyncadd [#allocation4], %s584
      %s587 = sshll.u32 [#allocation13], 4
      %s588 = int_to_ptr.vmem [resolvable:$true] %s587
      %590 = dma.vmem_to_hbm [thread:$0]  %s588, 128, %s10, [#allocation4]
    $region69: #{tpu_custom_call.1} parent=1 // pred_fallthru
      _
    // Predicated region
    $region70: #{tpu_custom_call.1} parent=1 // pred_check
      _
    $region71: #{tpu_custom_call.1} parent=1 // pred_check_branch
      %592 = sbr.rel (0) target = $region73
    $region72: #{tpu_custom_call.1} parent=1 // pred_region
      %593 = dma.done [#allocation4], 128
    $region73: #{tpu_custom_call.1} parent=1 // pred_fallthru
      _
    %594 = vsyncpa [#allocation3], 1
    %595 = vsyncpa [#allocation6], 1
    %596 = vsyncpa [#allocation9], 1
    %597 = vsyncpa [#allocation12], 1
    %598 = vsyncpa [#allocation4], 1

</llo_original>
